<compile_context>
chip_gen: v5e
topology: v5e:2x2
jax: 0.10.0
libtpu: 0.0.40
codegen_flags: <defaults>
</compile_context>

<pallas_src>
import functools

import jax
import jax.numpy as jnp
import numpy as np
from jax.experimental import pallas as pl
from jax.experimental.pallas import tpu as pltpu


def _round_up(x, m):
    return (x + m - 1) // m * m


def _pick_tile_h(hout, wout, target_rows):
    """Largest TH dividing Hout with TH*Wout <= target_rows (falls back to 1)."""
    th = 1
    for cand in range(1, hout + 1):
        if hout % cand == 0 and cand * wout <= target_rows:
            th = cand
    return th


def _conv_stats_kernel(x_ref, w_ref, y_ref, stats_ref, patch_ref, *, KH, KW,
                       compute_dtype):
    """One output row-stripe: im2col -> single MXU matmul -> conv tile + BN partials.

    x_ref:     (1, Hp, Wp, Cin)       full padded image of one batch element
                                      (VMEM-resident across the row-stripe axis)
    w_ref:     (KH*KW*Cin, Cp)        reshaped, Cout-padded weight (grid invariant)
    y_ref:     (1, TH, Wout, Cp)      f32 conv output tile (lane-dense, Cp % 128 == 0)
    stats_ref: (1, 2, Cp)             per-tile (sum, sum_sq) channel partials
    patch_ref: (TH*Wout, KH*KW*Cin)   f32 im2col scratch in VMEM
    """
    _, TH, Wout, Cp = y_ref.shape
    Cin = x_ref.shape[-1]

    hb = pl.program_id(1)
    h0 = pl.multiple_of(hb * TH, TH)          # first output row of this stripe

    # Build the im2col patch once per tile (the only window copies per step).
    for kh in range(KH):
        for kw in range(KW):
            c0 = (kh * KW + kw) * Cin
            win = x_ref[:, pl.ds(h0 + kh, TH), kw:kw + Wout, :]   # (1, TH, Wout, Cin)
            patch_ref[:, c0:c0 + Cin] = win.astype(jnp.float32).reshape(TH * Wout, Cin)

    lhs = patch_ref[...]
    if jnp.dtype(compute_dtype) != jnp.dtype(jnp.float32):
        lhs = lhs.astype(compute_dtype)       # bf16 MXU operands on v6e/v7x
    acc = jnp.dot(lhs, w_ref[...], preferred_element_type=jnp.float32)  # (TH*Wout, Cp)

    y_ref[...] = acc.reshape(1, TH, Wout, Cp)

    # Fused BatchNorm partial statistics (finished as E[x^2]-E[x]^2 in f32 outside).
    s = jnp.sum(acc, axis=0, keepdims=True)            # (1, Cp)
    s2 = jnp.sum(acc * acc, axis=0, keepdims=True)     # (1, Cp)
    stats_ref[...] = jnp.concatenate([s, s2], axis=0).reshape(1, 2, Cp)


def _bn_relu_kernel(y_ref, scale_ref, shift_ref, o_ref):
    """Elementwise y * scale + shift, ReLU over one lane-dense conv-output tile."""
    Cp = y_ref.shape[-1]
    y = y_ref[...]                                     # f32
    scale = scale_ref[...].reshape(1, 1, 1, Cp)
    shift = shift_ref[...].reshape(1, 1, 1, Cp)
    o_ref[...] = jnp.maximum(y * scale + shift, 0.0).astype(o_ref.dtype)


def basic_conv_forward(x_nchw, w_oihw, gamma, beta, *, padding=0, eps=1e-5,
                       compute_dtype=jnp.float32, target_rows=512):
    """Pallas BasicConv forward (stride=1, dilation=1, groups=1, bias=False)."""
    N, Cin, H, W = x_nchw.shape
    Cout, Cin_w, KH, KW = w_oihw.shape
    assert Cin == Cin_w, "groups != 1 not supported"
    Hout = H + 2 * padding - KH + 1
    Wout = W + 2 * padding - KW + 1
    Hp, Wp = H + 2 * padding, W + 2 * padding

    Cp = _round_up(Cout, 128)        # lane-dense channel dim inside the kernels
    KKC = KH * KW * Cin

    # ---- layout glue (kept here to preserve the NCHW nn.Module interface) ----
    # Padding is applied once; the NHWC<->NCHW transposes could be dropped if
    # the surrounding model ran channels-last.
    x = jnp.transpose(x_nchw, (0, 2, 3, 1)).astype(compute_dtype)          # NHWC
    x = jnp.pad(x, ((0, 0), (padding, padding), (padding, padding), (0, 0)))
    w = jnp.transpose(w_oihw, (2, 3, 1, 0)).reshape(KKC, Cout)             # HWIO -> (KKC, Cout)
    w = jnp.pad(w, ((0, 0), (0, Cp - Cout))).astype(compute_dtype)
    gamma_p = jnp.pad(jnp.ravel(gamma).astype(jnp.float32), (0, Cp - Cout))
    beta_p = jnp.pad(jnp.ravel(beta).astype(jnp.float32), (0, Cp - Cout))

    TH = _pick_tile_h(Hout, Wout, target_rows)
    grid_h = Hout // TH
    grid = (N, grid_h)
    cparams = pltpu.CompilerParams(
        dimension_semantics=("parallel", "parallel"),   # megacore-shardable on v7x
        vmem_limit_bytes=32 * 1024 * 1024,              # explicit; retune TH per generation
    )

    # ---- pass 1: conv tiles + per-tile BatchNorm partial sums ----
    conv_out, stats = pl.pallas_call(
        functools.partial(_conv_stats_kernel, KH=KH, KW=KW,
                          compute_dtype=compute_dtype),
        grid=grid,
        in_specs=[
            # full padded image per batch element; stays VMEM-resident across hb
            pl.BlockSpec((1, Hp, Wp, Cin), lambda n, hb: (n, 0, 0, 0)),
            # grid-invariant weight  # TODO(synk): pipeline_mode=pl.Buffered(1)
            # would drop its second buffer; omitted to keep lowering conservative.
            pl.BlockSpec((KKC, Cp), lambda n, hb: (0, 0)),
        ],
        out_specs=(
            pl.BlockSpec((1, TH, Wout, Cp), lambda n, hb: (n, hb, 0, 0)),
            pl.BlockSpec((1, 2, Cp), lambda n, hb: (n * grid_h + hb, 0, 0)),
        ),
        out_shape=(
            jax.ShapeDtypeStruct((N, Hout, Wout, Cp), jnp.float32),
            jax.ShapeDtypeStruct((N * grid_h, 2, Cp), jnp.float32),
        ),
        scratch_shapes=[pltpu.VMEM((TH * Wout, KKC), jnp.float32)],
        compiler_params=cparams,
    )(x, w)

    # ---- tiny per-channel reduction: global batch statistics -> scale/shift ----
    count = jnp.float32(N * Hout * Wout)
    tot = jnp.sum(stats, axis=0)                              # (2, Cp)
    mean = tot[0] / count
    var = jnp.maximum(tot[1] / count - mean * mean, 0.0)      # biased batch variance
    inv = jax.lax.rsqrt(var + eps)
    scale = (gamma_p * inv).reshape(1, Cp)
    shift = (beta_p - mean * gamma_p * inv).reshape(1, Cp)

    # ---- pass 2: normalize + affine + ReLU (elementwise, lane-dense tiles) ----
    out_p = pl.pallas_call(
        _bn_relu_kernel,
        grid=grid,
        in_specs=[
            pl.BlockSpec((1, TH, Wout, Cp), lambda n, hb: (n, hb, 0, 0)),
            pl.BlockSpec((1, Cp), lambda n, hb: (0, 0)),
            pl.BlockSpec((1, Cp), lambda n, hb: (0, 0)),
        ],
        out_specs=pl.BlockSpec((1, TH, Wout, Cp), lambda n, hb: (n, hb, 0, 0)),
        out_shape=jax.ShapeDtypeStruct((N, Hout, Wout, Cp), x_nchw.dtype),
        compiler_params=cparams,
    )(conv_out, scale, shift)

    out = out_p[:, :, :, :Cout]                                # drop channel padding
    return jnp.transpose(out, (0, 3, 1, 2))                    # NHWC -> NCHW


def _reference_forward(x_nchw, w_oihw, gamma, beta, *, padding=0, eps=1e-5):
    """Pure-JAX f32 reference with identical semantics."""
    x = jnp.transpose(x_nchw, (0, 2, 3, 1)).astype(jnp.float32)
    w = jnp.transpose(w_oihw, (2, 3, 1, 0)).astype(jnp.float32)
    y = jax.lax.conv_general_dilated(
        x, w, window_strides=(1, 1),
        padding=((padding, padding), (padding, padding)),
        dimension_numbers=("NHWC", "HWIO", "NHWC"))
    mean = jnp.mean(y, axis=(0, 1, 2), keepdims=True)
    var = jnp.mean((y - mean) ** 2, axis=(0, 1, 2), keepdims=True)
    y = (y - mean) * jax.lax.rsqrt(var + eps) * gamma + beta
    y = jnp.maximum(y, 0.0)
    return jnp.transpose(y, (0, 3, 1, 2))


if __name__ == "__main__":
    # BasicConv(in_planes=4, out_planes=8, kernel_size=3, padding=1) at small shapes.
    N, Cin, H, W = 2, 4, 16, 16
    Cout, K, pad = 8, 3, 1

    key = jax.random.PRNGKey(0)
    kx, kw = jax.random.split(key)
    x = jax.random.normal(kx, (N, Cin, H, W), dtype=jnp.float32)
    weight = jax.random.normal(kw, (Cout, Cin, K, K), dtype=jnp.float32) * 0.1
    gamma = 1.0 + 0.1 * jnp.arange(Cout, dtype=jnp.float32)
    beta = 0.05 * jnp.arange(Cout, dtype=jnp.float32) - 0.2

    # Small target_rows so the toy shapes exercise a multi-step (N, Hout-tile) grid.
    out = basic_conv_forward(x, weight, gamma, beta, padding=pad, target_rows=128)
    out = jax.block_until_ready(out)
    ref = jax.block_until_ready(_reference_forward(x, weight, gamma, beta, padding=pad))
    assert out.shape == (N, Cout, H, W)
    np.testing.assert_allclose(np.asarray(out), np.asarray(ref), rtol=1e-4, atol=1e-4)

    # bf16 MXU operand path (v6e/v7x recommendation); f32 accumulation, looser tol.
    out_bf16 = jax.block_until_ready(
        basic_conv_forward(x, weight, gamma, beta, padding=pad,
                           compute_dtype=jnp.bfloat16, target_rows=128))
    np.testing.assert_allclose(np.asarray(out_bf16), np.asarray(ref),
                               rtol=5e-2, atol=5e-2)

    print("KERNEL_OK")
</pallas_src>

<mosaic_0001>
module attributes {stable_mosaic.version = 11 : i64} {
  func.func @_conv_stats_kernel(%arg0: i32, %arg1: i32, %arg2: memref<1x18x18x4xf32, #tpu.memory_space<vmem>>, %arg3: memref<36x128xf32, #tpu.memory_space<vmem>>, %arg4: memref<1x8x16x128xf32, #tpu.memory_space<vmem>>, %arg5: memref<1x2x128xf32, #tpu.memory_space<vmem>>, %arg6: memref<128x36xf32, #tpu.memory_space<vmem>>) attributes {dimension_semantics = [#tpu.dimension_semantics<parallel>, #tpu.dimension_semantics<parallel>], iteration_bounds = array<i64: 2, 2>, scalar_prefetch = 0 : i64, scratch_operands = 1 : i64, tpu.core_type = #tpu.core_type<tc>, window_params = [{transform_indices = @transform_0, window_bounds = array<i64: 1, 18, 18, 4>}, {pipeline_mode = #tpu.pipeline_mode<synchronous>, transform_indices = @transform_1, window_bounds = array<i64: 36, 128>}, {transform_indices = @transform_2, window_bounds = array<i64: 1, 8, 16, 128>}, {transform_indices = @transform_3, window_bounds = array<i64: 1, 2, 128>}]} {
    %c8_i32 = arith.constant 8 : i32
    %0 = arith.muli %arg1, %c8_i32 : i32
    %1 = tpu.assume_multiple %0, 8 : i32
    %c0_i32 = arith.constant 0 : i32
    %2 = arith.addi %1, %c0_i32 : i32
    %c0 = arith.constant 0 : index
    %3 = arith.index_cast %2 : i32 to index
    %c0_0 = arith.constant 0 : index
    %c0_1 = arith.constant 0 : index
    %4 = vector.load %arg2[%c0, %3, %c0_0, %c0_1] : memref<1x18x18x4xf32, #tpu.memory_space<vmem>>, vector<1x8x16x4xf32>
    %5 = vector.shape_cast %4 : vector<1x8x16x4xf32> to vector<128x4xf32>
    %c0_2 = arith.constant 0 : index
    %c0_3 = arith.constant 0 : index
    %6 = vector.load %arg6[%c0_2, %c0_3] : memref<128x36xf32, #tpu.memory_space<vmem>>, vector<128x4xf32>
    tpu.vector_store %arg6[%c0_2, %c0_3], %5 {strides = array<i32>} : memref<128x36xf32, #tpu.memory_space<vmem>>, vector<128x4xf32>,
    %c0_i32_4 = arith.constant 0 : i32
    %7 = arith.addi %1, %c0_i32_4 : i32
    %c0_5 = arith.constant 0 : index
    %8 = arith.index_cast %7 : i32 to index
    %c1 = arith.constant 1 : index
    %c0_6 = arith.constant 0 : index
    %9 = vector.load %arg2[%c0_5, %8, %c1, %c0_6] : memref<1x18x18x4xf32, #tpu.memory_space<vmem>>, vector<1x8x16x4xf32>
    %10 = vector.shape_cast %9 : vector<1x8x16x4xf32> to vector<128x4xf32>
    %c0_7 = arith.constant 0 : index
    %c4 = arith.constant 4 : index
    %11 = vector.load %arg6[%c0_7, %c4] : memref<128x36xf32, #tpu.memory_space<vmem>>, vector<128x4xf32>
    tpu.vector_store %arg6[%c0_7, %c4], %10 {strides = array<i32>} : memref<128x36xf32, #tpu.memory_space<vmem>>, vector<128x4xf32>,
    %c0_i32_8 = arith.constant 0 : i32
    %12 = arith.addi %1, %c0_i32_8 : i32
    %c0_9 = arith.constant 0 : index
    %13 = arith.index_cast %12 : i32 to index
    %c2 = arith.constant 2 : index
    %c0_10 = arith.constant 0 : index
    %14 = vector.load %arg2[%c0_9, %13, %c2, %c0_10] : memref<1x18x18x4xf32, #tpu.memory_space<vmem>>, vector<1x8x16x4xf32>
    %15 = vector.shape_cast %14 : vector<1x8x16x4xf32> to vector<128x4xf32>
    %c0_11 = arith.constant 0 : index
    %c8 = arith.constant 8 : index
    %16 = vector.load %arg6[%c0_11, %c8] : memref<128x36xf32, #tpu.memory_space<vmem>>, vector<128x4xf32>
    tpu.vector_store %arg6[%c0_11, %c8], %15 {strides = array<i32>} : memref<128x36xf32, #tpu.memory_space<vmem>>, vector<128x4xf32>,
    %c1_i32 = arith.constant 1 : i32
    %17 = arith.addi %1, %c1_i32 : i32
    %c0_12 = arith.constant 0 : index
    %18 = arith.index_cast %17 : i32 to index
    %c0_13 = arith.constant 0 : index
    %c0_14 = arith.constant 0 : index
    %19 = vector.load %arg2[%c0_12, %18, %c0_13, %c0_14] : memref<1x18x18x4xf32, #tpu.memory_space<vmem>>, vector<1x8x16x4xf32>
    %20 = vector.shape_cast %19 : vector<1x8x16x4xf32> to vector<128x4xf32>
    %c0_15 = arith.constant 0 : index
    %c12 = arith.constant 12 : index
    %21 = vector.load %arg6[%c0_15, %c12] : memref<128x36xf32, #tpu.memory_space<vmem>>, vector<128x4xf32>
    tpu.vector_store %arg6[%c0_15, %c12], %20 {strides = array<i32>} : memref<128x36xf32, #tpu.memory_space<vmem>>, vector<128x4xf32>,
    %c1_i32_16 = arith.constant 1 : i32
    %22 = arith.addi %1, %c1_i32_16 : i32
    %c0_17 = arith.constant 0 : index
    %23 = arith.index_cast %22 : i32 to index
    %c1_18 = arith.constant 1 : index
    %c0_19 = arith.constant 0 : index
    %24 = vector.load %arg2[%c0_17, %23, %c1_18, %c0_19] : memref<1x18x18x4xf32, #tpu.memory_space<vmem>>, vector<1x8x16x4xf32>
    %25 = vector.shape_cast %24 : vector<1x8x16x4xf32> to vector<128x4xf32>
    %c0_20 = arith.constant 0 : index
    %c16 = arith.constant 16 : index
    %26 = vector.load %arg6[%c0_20, %c16] : memref<128x36xf32, #tpu.memory_space<vmem>>, vector<128x4xf32>
    tpu.vector_store %arg6[%c0_20, %c16], %25 {strides = array<i32>} : memref<128x36xf32, #tpu.memory_space<vmem>>, vector<128x4xf32>,
    %c1_i32_21 = arith.constant 1 : i32
    %27 = arith.addi %1, %c1_i32_21 : i32
    %c0_22 = arith.constant 0 : index
    %28 = arith.index_cast %27 : i32 to index
    %c2_23 = arith.constant 2 : index
    %c0_24 = arith.constant 0 : index
    %29 = vector.load %arg2[%c0_22, %28, %c2_23, %c0_24] : memref<1x18x18x4xf32, #tpu.memory_space<vmem>>, vector<1x8x16x4xf32>
    %30 = vector.shape_cast %29 : vector<1x8x16x4xf32> to vector<128x4xf32>
    %c0_25 = arith.constant 0 : index
    %c20 = arith.constant 20 : index
    %31 = vector.load %arg6[%c0_25, %c20] : memref<128x36xf32, #tpu.memory_space<vmem>>, vector<128x4xf32>
    tpu.vector_store %arg6[%c0_25, %c20], %30 {strides = array<i32>} : memref<128x36xf32, #tpu.memory_space<vmem>>, vector<128x4xf32>,
    %c2_i32 = arith.constant 2 : i32
    %32 = arith.addi %1, %c2_i32 : i32
    %c0_26 = arith.constant 0 : index
    %33 = arith.index_cast %32 : i32 to index
    %c0_27 = arith.constant 0 : index
    %c0_28 = arith.constant 0 : index
    %34 = vector.load %arg2[%c0_26, %33, %c0_27, %c0_28] : memref<1x18x18x4xf32, #tpu.memory_space<vmem>>, vector<1x8x16x4xf32>
    %35 = vector.shape_cast %34 : vector<1x8x16x4xf32> to vector<128x4xf32>
    %c0_29 = arith.constant 0 : index
    %c24 = arith.constant 24 : index
    %36 = vector.load %arg6[%c0_29, %c24] : memref<128x36xf32, #tpu.memory_space<vmem>>, vector<128x4xf32>
    tpu.vector_store %arg6[%c0_29, %c24], %35 {strides = array<i32>} : memref<128x36xf32, #tpu.memory_space<vmem>>, vector<128x4xf32>,
    %c2_i32_30 = arith.constant 2 : i32
    %37 = arith.addi %1, %c2_i32_30 : i32
    %c0_31 = arith.constant 0 : index
    %38 = arith.index_cast %37 : i32 to index
    %c1_32 = arith.constant 1 : index
    %c0_33 = arith.constant 0 : index
    %39 = vector.load %arg2[%c0_31, %38, %c1_32, %c0_33] : memref<1x18x18x4xf32, #tpu.memory_space<vmem>>, vector<1x8x16x4xf32>
    %40 = vector.shape_cast %39 : vector<1x8x16x4xf32> to vector<128x4xf32>
    %c0_34 = arith.constant 0 : index
    %c28 = arith.constant 28 : index
    %41 = vector.load %arg6[%c0_34, %c28] : memref<128x36xf32, #tpu.memory_space<vmem>>, vector<128x4xf32>
    tpu.vector_store %arg6[%c0_34, %c28], %40 {strides = array<i32>} : memref<128x36xf32, #tpu.memory_space<vmem>>, vector<128x4xf32>,
    %c2_i32_35 = arith.constant 2 : i32
    %42 = arith.addi %1, %c2_i32_35 : i32
    %c0_36 = arith.constant 0 : index
    %43 = arith.index_cast %42 : i32 to index
    %c2_37 = arith.constant 2 : index
    %c0_38 = arith.constant 0 : index
    %44 = vector.load %arg2[%c0_36, %43, %c2_37, %c0_38] : memref<1x18x18x4xf32, #tpu.memory_space<vmem>>, vector<1x8x16x4xf32>
    %45 = vector.shape_cast %44 : vector<1x8x16x4xf32> to vector<128x4xf32>
    %c0_39 = arith.constant 0 : index
    %c32 = arith.constant 32 : index
    %46 = vector.load %arg6[%c0_39, %c32] : memref<128x36xf32, #tpu.memory_space<vmem>>, vector<128x4xf32>
    tpu.vector_store %arg6[%c0_39, %c32], %45 {strides = array<i32>} : memref<128x36xf32, #tpu.memory_space<vmem>>, vector<128x4xf32>,
    %c0_40 = arith.constant 0 : index
    %c0_41 = arith.constant 0 : index
    %47 = vector.load %arg6[%c0_40, %c0_41] : memref<128x36xf32, #tpu.memory_space<vmem>>, vector<128x36xf32>
    %c0_42 = arith.constant 0 : index
    %c0_43 = arith.constant 0 : index
    %48 = vector.load %arg3[%c0_42, %c0_43] : memref<36x128xf32, #tpu.memory_space<vmem>>, vector<36x128xf32>
    %cst = arith.constant dense<0.000000e+00> : vector<128x128xf32>
    %49 = tpu.matmul %47, %48, %cst {dimension_numbers = #tpu.dot_dimension_numbers<[1], [0], [0], [1], [0, 0, 1, 1], [], []>} : vector<128x36xf32>, vector<36x128xf32>, vector<128x128xf32> -> vector<128x128xf32>
    %50 = vector.shape_cast %49 : vector<128x128xf32> to vector<1x8x16x128xf32>
    %c0_44 = arith.constant 0 : index
    %c0_45 = arith.constant 0 : index
    %c0_46 = arith.constant 0 : index
    %c0_47 = arith.constant 0 : index
    %51 = vector.load %arg4[%c0_44, %c0_45, %c0_46, %c0_47] : memref<1x8x16x128xf32, #tpu.memory_space<vmem>>, vector<1x8x16x128xf32>
    tpu.vector_store %arg4[%c0_44, %c0_45, %c0_46, %c0_47], %50 {strides = array<i32>} : memref<1x8x16x128xf32, #tpu.memory_space<vmem>>, vector<1x8x16x128xf32>,
    %cst_48 = arith.constant dense<0.000000e+00> : vector<128xf32>
    %52 = vector.multi_reduction <add>, %49, %cst_48 [0] : vector<128x128xf32> to vector<128xf32>
    %53 = vector.shape_cast %52 : vector<128xf32> to vector<1x128xf32>
    %54 = arith.mulf %49, %49 : vector<128x128xf32>
    %cst_49 = arith.constant dense<0.000000e+00> : vector<128xf32>
    %55 = vector.multi_reduction <add>, %54, %cst_49 [0] : vector<128x128xf32> to vector<128xf32>
    %56 = vector.shape_cast %55 : vector<128xf32> to vector<1x128xf32>
    %57 = tpu.concatenate %53, %56 in 0 : vector<1x128xf32>, vector<1x128xf32> -> vector<2x128xf32>
    %58 = vector.shape_cast %57 : vector<2x128xf32> to vector<1x2x128xf32>
    %c0_50 = arith.constant 0 : index
    %c0_51 = arith.constant 0 : index
    %c0_52 = arith.constant 0 : index
    %59 = vector.load %arg5[%c0_50, %c0_51, %c0_52] : memref<1x2x128xf32, #tpu.memory_space<vmem>>, vector<1x2x128xf32>
    tpu.vector_store %arg5[%c0_50, %c0_51, %c0_52], %58 {strides = array<i32>} : memref<1x2x128xf32, #tpu.memory_space<vmem>>, vector<1x2x128xf32>,
    return
  }
  func.func @transform_0(%arg0: i32, %arg1: i32) -> (i32, i32, i32, i32) {
    %c0_i32 = arith.constant 0 : i32
    %c0_i32_0 = arith.constant 0 : i32
    %c0_i32_1 = arith.constant 0 : i32
    %c0_i32_2 = arith.constant 0 : i32
    return %arg0, %c0_i32, %c0_i32_0, %c0_i32_1 : i32, i32, i32, i32
  }
  func.func @transform_1(%arg0: i32, %arg1: i32) -> (i32, i32) {
    %c0_i32 = arith.constant 0 : i32
    %c0_i32_0 = arith.constant 0 : i32
    %c0_i32_1 = arith.constant 0 : i32
    return %c0_i32, %c0_i32_0 : i32, i32
  }
  func.func @transform_2(%arg0: i32, %arg1: i32) -> (i32, i32, i32, i32) {
    %c0_i32 = arith.constant 0 : i32
    %c0_i32_0 = arith.constant 0 : i32
    %c0_i32_1 = arith.constant 0 : i32
    return %arg0, %arg1, %c0_i32, %c0_i32_0 : i32, i32, i32, i32
  }
  func.func @transform_3(%arg0: i32, %arg1: i32) -> (i32, i32, i32) {
    %c2_i32 = arith.constant 2 : i32
    %0 = arith.muli %arg0, %c2_i32 : i32
    %1 = arith.addi %0, %arg1 : i32
    %c0_i32 = arith.constant 0 : i32
    %c0_i32_0 = arith.constant 0 : i32
    %c0_i32_1 = arith.constant 0 : i32
    return %1, %c0_i32, %c0_i32_0 : i32, i32, i32
  }
}

</mosaic_0001>

<llo_original>
// kernel: tpu_custom_call.1
$region0: #{tpu_custom_call.1}
  #allocation0 [shape = 'u32[]', space=smem, size = 0x4, offset = 0x4, fixed_abs, tag = 'smem constant byte address 0x4 - core index']
  #allocation1 [shape = 'u32[72,128]{1,0:T(1,128)}', space=vmem, size = 0x9000, scoped, tag = 'internal scratch']
  #allocation2 [shape = 'f32[128,36]{1,0:T(8,128)}', space=vmem, size = 0x10000, scoped, tag = 'scratch operand']
  %s0 = inlined_call_operand.vmem [shape: f32[2,18,18,4], index: 0, kind: input, shape index: {}]
  %s1 = inlined_call_operand.vmem [shape: f32[36,128], index: 1, kind: input, shape index: {}]
  %s2 = inlined_call_operand.hbm [shape: f32[2,16,16,128], index: 2, kind: output, shape index: {0}]
  %s3 = inlined_call_operand.hbm [shape: f32[4,2,128], index: 3, kind: output, shape index: {1}]
  %4 = xla_tuple %s2, %s3
  %s5 = sld [smem:[#allocation0]]
  $region49: #{tpu_custom_call.1} parent=0
    _
  %s7 = ssub.s32 1, %s5
  %s8 = scalar_select 0, %s7, %s5
  $region1: #{tpu_custom_call.1} parent=0
    #allocation3 [shape = 'u8[131072]{0}', space=vmem, size = 0x20000, scoped, tag = 'output window, operand 0']
    #allocation4 [shape = 's32[2]{0}', space=sflag, size = 0x8, scoped, tag = 'scoped memory for tpu_custom_call.1']
    #allocation5 [shape = 'u8[2048]{0}', space=vmem, size = 0x800, scoped, tag = 'output window, operand 1']
    #allocation6 [shape = 's32[2]{0}', space=sflag, size = 0x8, scoped, tag = 'scoped memory for tpu_custom_call.1']
    %9 = vsyncpa [#allocation4], 0
    %s10 = scalar_lea.sflag [#allocation4], 1
    %11 = vsyncpa %s10, 0
    %12 = vsyncpa [#allocation6], 0
    %s13 = scalar_lea.sflag [#allocation6], 1
    %14 = vsyncpa %s13, 0
    loop: start=0, step=1, limit=6
    $region2: #{tpu_custom_call.1} parent=1 // loop_pre_header
      _
    $region3: #{tpu_custom_call.1} parent=1 // loop_header
      %s16 = sphi 0, %s20
      %p17 = scmp.ge.s32.totalorder %s16, 6
      %s23 = sphi 0, %s35
      %s24 = sphi 0, %s31
      %s25 = sphi 0, %s23
      %s26 = sphi 0, %s24
      %s27 = sphi 0, %s25
      %s28 = sphi 0, %s26
      %s38 = sphi 0, %s40
      %s41 = sphi 0, %s38
      %s42 = sphi 0, %s41
      %s58 = sphi 0, %s42
      %s62 = sphi 0, %s62
      %s64 = sphi 0, %s62
      %s65 = sphi 0, %s64
      %s79 = sphi 0, %s65
      %s87 = sphi 0, %s89
      %s90 = sphi 0, %s87
      %s91 = sphi 0, %s90
      %s107 = sphi 0, %s91
      %s117 = sphi 0, %s119
      %s120 = sphi 0, %s117
      %s121 = sphi 0, %s120
      %s137 = sphi 0, %s121
    $region4: #{tpu_custom_call.1} parent=1 // loop_header_branch
      %19 = sbr.rel (%p17) target = $region8
    $region5: #{tpu_custom_call.1} parent=1 // loop_body
      %s21 = ssub.s32 %s16, 1
      %s22 = ssub.s32 %s16, 2
      %s29 = sadd.s32 1, %s24
      %p30 = scmp.ge.s32.totalorder %s29, 2
      %s31 = scalar_select %p30, 0, %s29
      %s32 = sadd.s32 1, %s23
      %s33 = scalar_select %p30, %s32, %s23
      %p34 = scmp.ge.s32.totalorder %s33, 2
      %s35 = scalar_select %p34, 0, %s33
      %s36 = ssub.s32 %s23, %s35
      %p37 = scmp.eq.s32.totalorder %s36, 0
      %s39 = sadd.s32 %s38, 1
      %s40 = scalar_select %p37, %s38, %s39
      %p43 = pneg %p37
      %p44 = scmp.eq.s32.totalorder %s16, 3
      %p45 = por %p43, %p44
      %p46 = scmp.ne.s32.totalorder %s38, %s41
      %p47 = scmp.eq.s32.totalorder %s16, 0
      %p48 = por %p46, %p47
      %p49 = scmp.ne.s32.totalorder %s38, %s41
      %p50 = scmp.eq.s32.totalorder %s21, 3
      %p51 = por %p49, %p50
      %p52 = scmp.ne.s32.totalorder %s41, %s42
      %p53 = scmp.eq.s32.totalorder %s21, 0
      %p54 = por %p52, %p53
      %p55 = scmp.ne.s32.totalorder %s41, %s42
      %p56 = scmp.eq.s32.totalorder %s22, 3
      %p57 = por %p55, %p56
      %p59 = scmp.ne.s32.totalorder %s42, %s58
      %p60 = scmp.eq.s32.totalorder %s22, 0
      %p61 = por %p59, %p60
      %s63 = sadd.s32 %s62, 1
      %p66 = scmp.eq.s32.totalorder %s16, 3
      %p67 = scmp.ne.s32.totalorder %s62, %s64
      %p68 = scmp.eq.s32.totalorder %s16, 0
      %p69 = por %p67, %p68
      %p70 = scmp.ne.s32.totalorder %s62, %s64
      %p71 = scmp.eq.s32.totalorder %s21, 3
      %p72 = por %p70, %p71
      %p73 = scmp.ne.s32.totalorder %s64, %s65
      %p74 = scmp.eq.s32.totalorder %s21, 0
      %p75 = por %p73, %p74
      %p76 = scmp.ne.s32.totalorder %s64, %s65
      %p77 = scmp.eq.s32.totalorder %s22, 3
      %p78 = por %p76, %p77
      %p80 = scmp.ne.s32.totalorder %s65, %s79
      %p81 = scmp.eq.s32.totalorder %s22, 0
      %p82 = por %p80, %p81
      %s83 = ssub.s32 %s23, %s35
      %s84 = ssub.s32 %s24, %s31
      %s85 = sor.u32 %s83, %s84
      %p86 = scmp.eq.s32.totalorder %s85, 0
      %s88 = sadd.s32 %s87, 1
      %s89 = scalar_select %p86, %s87, %s88
      %p92 = pneg %p86
      %p93 = scmp.eq.s32.totalorder %s16, 3
      %p94 = por %p92, %p93
      %p95 = scmp.ne.s32.totalorder %s87, %s90
      %p96 = scmp.eq.s32.totalorder %s16, 0
      %p97 = por %p95, %p96
      %p98 = scmp.ne.s32.totalorder %s87, %s90
      %p99 = scmp.eq.s32.totalorder %s21, 3
      %p100 = por %p98, %p99
      %p101 = scmp.ne.s32.totalorder %s90, %s91
      %p102 = scmp.eq.s32.totalorder %s21, 0
      %p103 = por %p101, %p102
      %p104 = scmp.ne.s32.totalorder %s90, %s91
      %p105 = scmp.eq.s32.totalorder %s22, 3
      %p106 = por %p104, %p105
      %p108 = scmp.ne.s32.totalorder %s91, %s107
      %p109 = scmp.eq.s32.totalorder %s22, 0
      %p110 = por %p108, %p109
      %s111 = smul.u32 %s23, 2
      %s112 = sadd.s32 %s111, %s24
      %s113 = smul.u32 %s35, 2
      %s114 = sadd.s32 %s113, %s31
      %s115 = ssub.s32 %s112, %s114
      %p116 = scmp.eq.s32.totalorder %s115, 0
      %s118 = sadd.s32 %s117, 1
      %s119 = scalar_select %p116, %s117, %s118
      %p122 = pneg %p116
      %p123 = scmp.eq.s32.totalorder %s16, 3
      %p124 = por %p122, %p123
      %p125 = scmp.ne.s32.totalorder %s117, %s120
      %p126 = scmp.eq.s32.totalorder %s16, 0
      %p127 = por %p125, %p126
      %p128 = scmp.ne.s32.totalorder %s117, %s120
      %p129 = scmp.eq.s32.totalorder %s21, 3
      %p130 = por %p128, %p129
      %p131 = scmp.ne.s32.totalorder %s120, %s121
      %p132 = scmp.eq.s32.totalorder %s21, 0
      %p133 = por %p131, %p132
      %p134 = scmp.ne.s32.totalorder %s120, %s121
      %p135 = scmp.eq.s32.totalorder %s22, 3
      %p136 = por %p134, %p135
      %p138 = scmp.ne.s32.totalorder %s121, %s137
      %p139 = scmp.eq.s32.totalorder %s22, 0
      %p140 = por %p138, %p139
      %p141 = scmp.le.s32.totalorder 1, %s16
      %p142 = scmp.lt.s32.totalorder %s16, 5
      %p143 = pnand %p141, %p142
      %p144 = pneg %p143
      // Predicated region
      $region9: #{tpu_custom_call.1} parent=5 // pred_check
        _
      $region10: #{tpu_custom_call.1} parent=5 // pred_check_branch
        %146 = sbr.rel (%p143) target = $region12
      $region11: #{tpu_custom_call.1} parent=5 // pred_region
        %s147 = ssub.s32 %s16, 1
        // Predicated region
        $region13: #{tpu_custom_call.1} parent=11 // pred_check
          %p148 = pneg %p75
        $region14: #{tpu_custom_call.1} parent=11 // pred_check_branch
          %150 = sbr.rel (%p148) target = $region16
        $region15: #{tpu_custom_call.1} parent=11 // pred_region
          _
        $region16: #{tpu_custom_call.1} parent=11 // pred_fallthru
          _
      $region12: #{tpu_custom_call.1} parent=5 // pred_fallthru
        _
      %p151 = scmp.lt.s32.totalorder %s16, 4
      // Predicated region
      $region17: #{tpu_custom_call.1} parent=5 // pred_check
        %p152 = pneg %p151
      $region18: #{tpu_custom_call.1} parent=5 // pred_check_branch
        %154 = sbr.rel (%p152) target = $region20
      $region19: #{tpu_custom_call.1} parent=5 // pred_region
        // Predicated region
        $region21: #{tpu_custom_call.1} parent=19 // pred_check
          %p155 = pneg %p48
        $region22: #{tpu_custom_call.1} parent=19 // pred_check_branch
          %157 = sbr.rel (%p155) target = $region24
        $region23: #{tpu_custom_call.1} parent=19 // pred_region
          %p158 = scmp.lt.s32.totalorder %s23, 1
          %s159 = scalar_select %p158, %s23, 1
          %s160 = smul.addr %s159, 54
          %s161 = smul.addr %s160, 8
          %s162 = scalar_lea.vmem %s0, %s161
        $region24: #{tpu_custom_call.1} parent=19 // pred_fallthru
          _
      $region20: #{tpu_custom_call.1} parent=5 // pred_fallthru
        _
      %p163 = scmp.le.s32.totalorder 1, %s16
      %p164 = scmp.lt.s32.totalorder %s16, 5
      %p165 = pnand %p163, %p164
      %p166 = pneg %p165
      // Predicated region
      $region25: #{tpu_custom_call.1} parent=5 // pred_check
        _
      $region26: #{tpu_custom_call.1} parent=5 // pred_check_branch
        %168 = sbr.rel (%p165) target = $region28
      $region27: #{tpu_custom_call.1} parent=5 // pred_region
        %s169 = ssub.s32 %s16, 1
        %p170 = scmp.lt.s32.totalorder %s25, 1
        %s171 = scalar_select %p170, %s25, 1
        %s172 = smul.addr %s171, 54
        %s173 = smul.addr %s172, 8
        %s174 = scalar_lea.vmem %s0, %s173
        %p175 = pneg %p54
        %p176 = pneg %p51
        %p177 = pneg %p75
        %p178 = pneg %p72
        %p179 = pneg %p103
        %p180 = pneg %p100
        %s181 = sand.u32 %s90, 1
        %s182 = scalar_lea.sflag [#allocation4], %s181
        %s183 = sand.u32 %s90, 1
        %s184 = smul.addr %s183, 128
        %s185 = scalar_lea.vmem [#allocation3], %s184
        %p186 = pneg %p133
        %p187 = pneg %p130
        %s188 = sand.u32 %s120, 1
        %s189 = scalar_lea.sflag [#allocation6], %s188
        %s190 = sand.u32 %s120, 1
        %s191 = smul.addr %s190, 2
        %s192 = scalar_lea.vmem [#allocation5], %s191
        %p193 = scmp.lt.s32.totalorder %s25, 1
        %s194 = scalar_select %p193, %s25, 1
        %s195 = smul.addr %s194, 54
        %s196 = smul.addr %s195, 8
        %s197 = scalar_lea.vmem %s0, %s196
        %s198 = smul.u32 8, %s26
        %s199 = smul.u32 %s25, 2
        %s200 = sadd.s32 %s199, %s26
        %s201 = smul.u32 %s26, 8
        %s202 = smul.u32 %s201, 24
        %s203 = scalar_lea.vmem %s197, %s202
        %v204 = vld [vmem:[%s203] sm:$0xff]
        %v205 = vld [vmem:[%s203 + $0x8] sm:$0xff]
        %v206 = vld [vmem:[%s203 + $0x18] sm:$0xff]
        %v207 = vld [vmem:[%s203 + $0x20] sm:$0xff]
        %v208 = vld [vmem:[%s203 + $0x30] sm:$0xff]
        %v209 = vld [vmem:[%s203 + $0x38] sm:$0xff]
        %v210 = vld [vmem:[%s203 + $0x48] sm:$0xff]
        %v211 = vld [vmem:[%s203 + $0x50] sm:$0xff]
        %v212 = vld [vmem:[%s203 + $0x60] sm:$0xff]
        %v213 = vld [vmem:[%s203 + $0x68] sm:$0xff]
        %v214 = vld [vmem:[%s203 + $0x78] sm:$0xff]
        %v215 = vld [vmem:[%s203 + $0x80] sm:$0xff]
        %v216 = vld [vmem:[%s203 + $0x90] sm:$0xff]
        %v217 = vld [vmem:[%s203 + $0x98] sm:$0xff]
        %v218 = vld [vmem:[%s203 + $0xa8] sm:$0xff]
        %v219 = vld [vmem:[%s203 + $0xb0] sm:$0xff]
        %vm220 = vcmask 31744
        %221 = vst.msk [vmem:[#allocation2] sm:$0xff] %vm220, %v204
        %222 = vst.msk [vmem:[#allocation2 + $0x8] sm:$0xff] %vm220, %v205
        %223 = vst.msk [vmem:[#allocation2 + $0x10] sm:$0xff] %vm220, %v206
        %224 = vst.msk [vmem:[#allocation2 + $0x18] sm:$0xff] %vm220, %v207
        %225 = vst.msk [vmem:[#allocation2 + $0x20] sm:$0xff] %vm220, %v208
        %226 = vst.msk [vmem:[#allocation2 + $0x28] sm:$0xff] %vm220, %v209
        %227 = vst.msk [vmem:[#allocation2 + $0x30] sm:$0xff] %vm220, %v210
        %228 = vst.msk [vmem:[#allocation2 + $0x38] sm:$0xff] %vm220, %v211
        %229 = vst.msk [vmem:[#allocation2 + $0x40] sm:$0xff] %vm220, %v212
        %230 = vst.msk [vmem:[#allocation2 + $0x48] sm:$0xff] %vm220, %v213
        %231 = vst.msk [vmem:[#allocation2 + $0x50] sm:$0xff] %vm220, %v214
        %232 = vst.msk [vmem:[#allocation2 + $0x58] sm:$0xff] %vm220, %v215
        %233 = vst.msk [vmem:[#allocation2 + $0x60] sm:$0xff] %vm220, %v216
        %234 = vst.msk [vmem:[#allocation2 + $0x68] sm:$0xff] %vm220, %v217
        %235 = vst.msk [vmem:[#allocation2 + $0x70] sm:$0xff] %vm220, %v218
        %236 = vst.msk [vmem:[#allocation2 + $0x78] sm:$0xff] %vm220, %v219
        %v237 = vld [vmem:[%s203 + $0x1] sm:$0xff]
        %v238 = vld [vmem:[%s203 + $0x9] sm:$0xff]
        %v239 = vld [vmem:[%s203 + $0x19] sm:$0xff]
        %v240 = vld [vmem:[%s203 + $0x21] sm:$0xff]
        %v241 = vld [vmem:[%s203 + $0x31] sm:$0xff]
        %v242 = vld [vmem:[%s203 + $0x39] sm:$0xff]
        %v243 = vld [vmem:[%s203 + $0x49] sm:$0xff]
        %v244 = vld [vmem:[%s203 + $0x51] sm:$0xff]
        %v245 = vld [vmem:[%s203 + $0x61] sm:$0xff]
        %v246 = vld [vmem:[%s203 + $0x69] sm:$0xff]
        %v247 = vld [vmem:[%s203 + $0x79] sm:$0xff]
        %v248 = vld [vmem:[%s203 + $0x81] sm:$0xff]
        %v249 = vld [vmem:[%s203 + $0x91] sm:$0xff]
        %v250 = vld [vmem:[%s203 + $0x99] sm:$0xff]
        %v251 = vld [vmem:[%s203 + $0xa9] sm:$0xff]
        %v252 = vld [vmem:[%s203 + $0xb1] sm:$0xff]
        %269 = vrot.lane.b32.xlu0 %v237, 4
        %v270 = vpop.permute.xlu0 %269
        %271 = vrot.lane.b32.xlu0 %v238, 4
        %v272 = vpop.permute.xlu0 %271
        %273 = vrot.lane.b32.xlu0 %v239, 4
        %v274 = vpop.permute.xlu0 %273
        %275 = vrot.lane.b32.xlu0 %v240, 4
        %v276 = vpop.permute.xlu0 %275
        %277 = vrot.lane.b32.xlu0 %v241, 4
        %v278 = vpop.permute.xlu0 %277
        %279 = vrot.lane.b32.xlu0 %v242, 4
        %v280 = vpop.permute.xlu0 %279
        %281 = vrot.lane.b32.xlu0 %v243, 4
        %v282 = vpop.permute.xlu0 %281
        %283 = vrot.lane.b32.xlu0 %v244, 4
        %v284 = vpop.permute.xlu0 %283
        %285 = vrot.lane.b32.xlu0 %v245, 4
        %v286 = vpop.permute.xlu0 %285
        %287 = vrot.lane.b32.xlu0 %v246, 4
        %v288 = vpop.permute.xlu0 %287
        %289 = vrot.lane.b32.xlu0 %v247, 4
        %v290 = vpop.permute.xlu0 %289
        %291 = vrot.lane.b32.xlu0 %v248, 4
        %v292 = vpop.permute.xlu0 %291
        %293 = vrot.lane.b32.xlu0 %v249, 4
        %v294 = vpop.permute.xlu0 %293
        %295 = vrot.lane.b32.xlu0 %v250, 4
        %v296 = vpop.permute.xlu0 %295
        %297 = vrot.lane.b32.xlu0 %v251, 4
        %v298 = vpop.permute.xlu0 %297
        %299 = vrot.lane.b32.xlu0 %v252, 4
        %v300 = vpop.permute.xlu0 %299
        %vm317 = vcmask 64544
        %318 = vst.msk [vmem:[#allocation2] sm:$0xff] %vm317, %v270
        %319 = vst.msk [vmem:[#allocation2 + $0x8] sm:$0xff] %vm317, %v272
        %320 = vst.msk [vmem:[#allocation2 + $0x10] sm:$0xff] %vm317, %v274
        %321 = vst.msk [vmem:[#allocation2 + $0x18] sm:$0xff] %vm317, %v276
        %322 = vst.msk [vmem:[#allocation2 + $0x20] sm:$0xff] %vm317, %v278
        %323 = vst.msk [vmem:[#allocation2 + $0x28] sm:$0xff] %vm317, %v280
        %324 = vst.msk [vmem:[#allocation2 + $0x30] sm:$0xff] %vm317, %v282
        %325 = vst.msk [vmem:[#allocation2 + $0x38] sm:$0xff] %vm317, %v284
        %326 = vst.msk [vmem:[#allocation2 + $0x40] sm:$0xff] %vm317, %v286
        %327 = vst.msk [vmem:[#allocation2 + $0x48] sm:$0xff] %vm317, %v288
        %328 = vst.msk [vmem:[#allocation2 + $0x50] sm:$0xff] %vm317, %v290
        %329 = vst.msk [vmem:[#allocation2 + $0x58] sm:$0xff] %vm317, %v292
        %330 = vst.msk [vmem:[#allocation2 + $0x60] sm:$0xff] %vm317, %v294
        %331 = vst.msk [vmem:[#allocation2 + $0x68] sm:$0xff] %vm317, %v296
        %332 = vst.msk [vmem:[#allocation2 + $0x70] sm:$0xff] %vm317, %v298
        %333 = vst.msk [vmem:[#allocation2 + $0x78] sm:$0xff] %vm317, %v300
        %v334 = vld [vmem:[%s203 + $0x2] sm:$0xff]
        %v335 = vld [vmem:[%s203 + $0xa] sm:$0xff]
        %v336 = vld [vmem:[%s203 + $0x1a] sm:$0xff]
        %v337 = vld [vmem:[%s203 + $0x22] sm:$0xff]
        %v338 = vld [vmem:[%s203 + $0x32] sm:$0xff]
        %v339 = vld [vmem:[%s203 + $0x3a] sm:$0xff]
        %v340 = vld [vmem:[%s203 + $0x4a] sm:$0xff]
        %v341 = vld [vmem:[%s203 + $0x52] sm:$0xff]
        %v342 = vld [vmem:[%s203 + $0x62] sm:$0xff]
        %v343 = vld [vmem:[%s203 + $0x6a] sm:$0xff]
        %v344 = vld [vmem:[%s203 + $0x7a] sm:$0xff]
        %v345 = vld [vmem:[%s203 + $0x82] sm:$0xff]
        %v346 = vld [vmem:[%s203 + $0x92] sm:$0xff]
        %v347 = vld [vmem:[%s203 + $0x9a] sm:$0xff]
        %v348 = vld [vmem:[%s203 + $0xaa] sm:$0xff]
        %v349 = vld [vmem:[%s203 + $0xb2] sm:$0xff]
        %366 = vrot.lane.b32.xlu0 %v334, 8
        %v367 = vpop.permute.xlu0 %366
        %368 = vrot.lane.b32.xlu0 %v335, 8
        %v369 = vpop.permute.xlu0 %368
        %370 = vrot.lane.b32.xlu0 %v336, 8
        %v371 = vpop.permute.xlu0 %370
        %372 = vrot.lane.b32.xlu0 %v337, 8
        %v373 = vpop.permute.xlu0 %372
        %374 = vrot.lane.b32.xlu0 %v338, 8
        %v375 = vpop.permute.xlu0 %374
        %376 = vrot.lane.b32.xlu0 %v339, 8
        %v377 = vpop.permute.xlu0 %376
        %378 = vrot.lane.b32.xlu0 %v340, 8
        %v379 = vpop.permute.xlu0 %378
        %380 = vrot.lane.b32.xlu0 %v341, 8
        %v381 = vpop.permute.xlu0 %380
        %382 = vrot.lane.b32.xlu0 %v342, 8
        %v383 = vpop.permute.xlu0 %382
        %384 = vrot.lane.b32.xlu0 %v343, 8
        %v385 = vpop.permute.xlu0 %384
        %386 = vrot.lane.b32.xlu0 %v344, 8
        %v387 = vpop.permute.xlu0 %386
        %388 = vrot.lane.b32.xlu0 %v345, 8
        %v389 = vpop.permute.xlu0 %388
        %390 = vrot.lane.b32.xlu0 %v346, 8
        %v391 = vpop.permute.xlu0 %390
        %392 = vrot.lane.b32.xlu0 %v347, 8
        %v393 = vpop.permute.xlu0 %392
        %394 = vrot.lane.b32.xlu0 %v348, 8
        %v395 = vpop.permute.xlu0 %394
        %396 = vrot.lane.b32.xlu0 %v349, 8
        %v397 = vpop.permute.xlu0 %396
        %vm414 = vcmask 97344
        %415 = vst.msk [vmem:[#allocation2] sm:$0xff] %vm414, %v367
        %416 = vst.msk [vmem:[#allocation2 + $0x8] sm:$0xff] %vm414, %v369
        %417 = vst.msk [vmem:[#allocation2 + $0x10] sm:$0xff] %vm414, %v371
        %418 = vst.msk [vmem:[#allocation2 + $0x18] sm:$0xff] %vm414, %v373
        %419 = vst.msk [vmem:[#allocation2 + $0x20] sm:$0xff] %vm414, %v375
        %420 = vst.msk [vmem:[#allocation2 + $0x28] sm:$0xff] %vm414, %v377
        %421 = vst.msk [vmem:[#allocation2 + $0x30] sm:$0xff] %vm414, %v379
        %422 = vst.msk [vmem:[#allocation2 + $0x38] sm:$0xff] %vm414, %v381
        %423 = vst.msk [vmem:[#allocation2 + $0x40] sm:$0xff] %vm414, %v383
        %424 = vst.msk [vmem:[#allocation2 + $0x48] sm:$0xff] %vm414, %v385
        %425 = vst.msk [vmem:[#allocation2 + $0x50] sm:$0xff] %vm414, %v387
        %426 = vst.msk [vmem:[#allocation2 + $0x58] sm:$0xff] %vm414, %v389
        %427 = vst.msk [vmem:[#allocation2 + $0x60] sm:$0xff] %vm414, %v391
        %428 = vst.msk [vmem:[#allocation2 + $0x68] sm:$0xff] %vm414, %v393
        %429 = vst.msk [vmem:[#allocation2 + $0x70] sm:$0xff] %vm414, %v395
        %430 = vst.msk [vmem:[#allocation2 + $0x78] sm:$0xff] %vm414, %v397
        %s431 = sadd.s32 %s201, 1
        %s432 = smul.u32 %s431, 24
        %s433 = scalar_lea.vmem %s197, %s432
        %v434 = vld [vmem:[%s433] sm:$0xff]
        %v435 = vld [vmem:[%s433 + $0x8] sm:$0xff]
        %v436 = vld [vmem:[%s433 + $0x18] sm:$0xff]
        %v437 = vld [vmem:[%s433 + $0x20] sm:$0xff]
        %v438 = vld [vmem:[%s433 + $0x30] sm:$0xff]
        %v439 = vld [vmem:[%s433 + $0x38] sm:$0xff]
        %v440 = vld [vmem:[%s433 + $0x48] sm:$0xff]
        %v441 = vld [vmem:[%s433 + $0x50] sm:$0xff]
        %v442 = vld [vmem:[%s433 + $0x60] sm:$0xff]
        %v443 = vld [vmem:[%s433 + $0x68] sm:$0xff]
        %v444 = vld [vmem:[%s433 + $0x78] sm:$0xff]
        %v445 = vld [vmem:[%s433 + $0x80] sm:$0xff]
        %v446 = vld [vmem:[%s433 + $0x90] sm:$0xff]
        %v447 = vld [vmem:[%s433 + $0x98] sm:$0xff]
        %v448 = vld [vmem:[%s433 + $0xa8] sm:$0xff]
        %v449 = vld [vmem:[%s433 + $0xb0] sm:$0xff]
        %466 = vrot.lane.b32.xlu0 %v434, 12
        %v467 = vpop.permute.xlu0 %466
        %468 = vrot.lane.b32.xlu0 %v435, 12
        %v469 = vpop.permute.xlu0 %468
        %470 = vrot.lane.b32.xlu0 %v436, 12
        %v471 = vpop.permute.xlu0 %470
        %472 = vrot.lane.b32.xlu0 %v437, 12
        %v473 = vpop.permute.xlu0 %472
        %474 = vrot.lane.b32.xlu0 %v438, 12
        %v475 = vpop.permute.xlu0 %474
        %476 = vrot.lane.b32.xlu0 %v439, 12
        %v477 = vpop.permute.xlu0 %476
        %478 = vrot.lane.b32.xlu0 %v440, 12
        %v479 = vpop.permute.xlu0 %478
        %480 = vrot.lane.b32.xlu0 %v441, 12
        %v481 = vpop.permute.xlu0 %480
        %482 = vrot.lane.b32.xlu0 %v442, 12
        %v483 = vpop.permute.xlu0 %482
        %484 = vrot.lane.b32.xlu0 %v443, 12
        %v485 = vpop.permute.xlu0 %484
        %486 = vrot.lane.b32.xlu0 %v444, 12
        %v487 = vpop.permute.xlu0 %486
        %488 = vrot.lane.b32.xlu0 %v445, 12
        %v489 = vpop.permute.xlu0 %488
        %490 = vrot.lane.b32.xlu0 %v446, 12
        %v491 = vpop.permute.xlu0 %490
        %492 = vrot.lane.b32.xlu0 %v447, 12
        %v493 = vpop.permute.xlu0 %492
        %494 = vrot.lane.b32.xlu0 %v448, 12
        %v495 = vpop.permute.xlu0 %494
        %496 = vrot.lane.b32.xlu0 %v449, 12
        %v497 = vpop.permute.xlu0 %496
        %vm514 = vcmask 130144
        %515 = vst.msk [vmem:[#allocation2] sm:$0xff] %vm514, %v467
        %516 = vst.msk [vmem:[#allocation2 + $0x8] sm:$0xff] %vm514, %v469
        %517 = vst.msk [vmem:[#allocation2 + $0x10] sm:$0xff] %vm514, %v471
        %518 = vst.msk [vmem:[#allocation2 + $0x18] sm:$0xff] %vm514, %v473
        %519 = vst.msk [vmem:[#allocation2 + $0x20] sm:$0xff] %vm514, %v475
        %520 = vst.msk [vmem:[#allocation2 + $0x28] sm:$0xff] %vm514, %v477
        %521 = vst.msk [vmem:[#allocation2 + $0x30] sm:$0xff] %vm514, %v479
        %522 = vst.msk [vmem:[#allocation2 + $0x38] sm:$0xff] %vm514, %v481
        %523 = vst.msk [vmem:[#allocation2 + $0x40] sm:$0xff] %vm514, %v483
        %524 = vst.msk [vmem:[#allocation2 + $0x48] sm:$0xff] %vm514, %v485
        %525 = vst.msk [vmem:[#allocation2 + $0x50] sm:$0xff] %vm514, %v487
        %526 = vst.msk [vmem:[#allocation2 + $0x58] sm:$0xff] %vm514, %v489
        %527 = vst.msk [vmem:[#allocation2 + $0x60] sm:$0xff] %vm514, %v491
        %528 = vst.msk [vmem:[#allocation2 + $0x68] sm:$0xff] %vm514, %v493
        %529 = vst.msk [vmem:[#allocation2 + $0x70] sm:$0xff] %vm514, %v495
        %530 = vst.msk [vmem:[#allocation2 + $0x78] sm:$0xff] %vm514, %v497
        %v531 = vld [vmem:[%s433 + $0x1] sm:$0xff]
        %v532 = vld [vmem:[%s433 + $0x9] sm:$0xff]
        %v533 = vld [vmem:[%s433 + $0x19] sm:$0xff]
        %v534 = vld [vmem:[%s433 + $0x21] sm:$0xff]
        %v535 = vld [vmem:[%s433 + $0x31] sm:$0xff]
        %v536 = vld [vmem:[%s433 + $0x39] sm:$0xff]
        %v537 = vld [vmem:[%s433 + $0x49] sm:$0xff]
        %v538 = vld [vmem:[%s433 + $0x51] sm:$0xff]
        %v539 = vld [vmem:[%s433 + $0x61] sm:$0xff]
        %v540 = vld [vmem:[%s433 + $0x69] sm:$0xff]
        %v541 = vld [vmem:[%s433 + $0x79] sm:$0xff]
        %v542 = vld [vmem:[%s433 + $0x81] sm:$0xff]
        %v543 = vld [vmem:[%s433 + $0x91] sm:$0xff]
        %v544 = vld [vmem:[%s433 + $0x99] sm:$0xff]
        %v545 = vld [vmem:[%s433 + $0xa9] sm:$0xff]
        %v546 = vld [vmem:[%s433 + $0xb1] sm:$0xff]
        %563 = vrot.lane.b32.xlu0 %v531, 16
        %v564 = vpop.permute.xlu0 %563
        %565 = vrot.lane.b32.xlu0 %v532, 16
        %v566 = vpop.permute.xlu0 %565
        %567 = vrot.lane.b32.xlu0 %v533, 16
        %v568 = vpop.permute.xlu0 %567
        %569 = vrot.lane.b32.xlu0 %v534, 16
        %v570 = vpop.permute.xlu0 %569
        %571 = vrot.lane.b32.xlu0 %v535, 16
        %v572 = vpop.permute.xlu0 %571
        %573 = vrot.lane.b32.xlu0 %v536, 16
        %v574 = vpop.permute.xlu0 %573
        %575 = vrot.lane.b32.xlu0 %v537, 16
        %v576 = vpop.permute.xlu0 %575
        %577 = vrot.lane.b32.xlu0 %v538, 16
        %v578 = vpop.permute.xlu0 %577
        %579 = vrot.lane.b32.xlu0 %v539, 16
        %v580 = vpop.permute.xlu0 %579
        %581 = vrot.lane.b32.xlu0 %v540, 16
        %v582 = vpop.permute.xlu0 %581
        %583 = vrot.lane.b32.xlu0 %v541, 16
        %v584 = vpop.permute.xlu0 %583
        %585 = vrot.lane.b32.xlu0 %v542, 16
        %v586 = vpop.permute.xlu0 %585
        %587 = vrot.lane.b32.xlu0 %v543, 16
        %v588 = vpop.permute.xlu0 %587
        %589 = vrot.lane.b32.xlu0 %v544, 16
        %v590 = vpop.permute.xlu0 %589
        %591 = vrot.lane.b32.xlu0 %v545, 16
        %v592 = vpop.permute.xlu0 %591
        %593 = vrot.lane.b32.xlu0 %v546, 16
        %v594 = vpop.permute.xlu0 %593
        %vm611 = vcmask 162944
        %612 = vst.msk [vmem:[#allocation2] sm:$0xff] %vm611, %v564
        %613 = vst.msk [vmem:[#allocation2 + $0x8] sm:$0xff] %vm611, %v566
        %614 = vst.msk [vmem:[#allocation2 + $0x10] sm:$0xff] %vm611, %v568
        %615 = vst.msk [vmem:[#allocation2 + $0x18] sm:$0xff] %vm611, %v570
        %616 = vst.msk [vmem:[#allocation2 + $0x20] sm:$0xff] %vm611, %v572
        %617 = vst.msk [vmem:[#allocation2 + $0x28] sm:$0xff] %vm611, %v574
        %618 = vst.msk [vmem:[#allocation2 + $0x30] sm:$0xff] %vm611, %v576
        %619 = vst.msk [vmem:[#allocation2 + $0x38] sm:$0xff] %vm611, %v578
        %620 = vst.msk [vmem:[#allocation2 + $0x40] sm:$0xff] %vm611, %v580
        %621 = vst.msk [vmem:[#allocation2 + $0x48] sm:$0xff] %vm611, %v582
        %622 = vst.msk [vmem:[#allocation2 + $0x50] sm:$0xff] %vm611, %v584
        %623 = vst.msk [vmem:[#allocation2 + $0x58] sm:$0xff] %vm611, %v586
        %624 = vst.msk [vmem:[#allocation2 + $0x60] sm:$0xff] %vm611, %v588
        %625 = vst.msk [vmem:[#allocation2 + $0x68] sm:$0xff] %vm611, %v590
        %626 = vst.msk [vmem:[#allocation2 + $0x70] sm:$0xff] %vm611, %v592
        %627 = vst.msk [vmem:[#allocation2 + $0x78] sm:$0xff] %vm611, %v594
        %v628 = vld [vmem:[%s433 + $0x2] sm:$0xff]
        %v629 = vld [vmem:[%s433 + $0xa] sm:$0xff]
        %v630 = vld [vmem:[%s433 + $0x1a] sm:$0xff]
        %v631 = vld [vmem:[%s433 + $0x22] sm:$0xff]
        %v632 = vld [vmem:[%s433 + $0x32] sm:$0xff]
        %v633 = vld [vmem:[%s433 + $0x3a] sm:$0xff]
        %v634 = vld [vmem:[%s433 + $0x4a] sm:$0xff]
        %v635 = vld [vmem:[%s433 + $0x52] sm:$0xff]
        %v636 = vld [vmem:[%s433 + $0x62] sm:$0xff]
        %v637 = vld [vmem:[%s433 + $0x6a] sm:$0xff]
        %v638 = vld [vmem:[%s433 + $0x7a] sm:$0xff]
        %v639 = vld [vmem:[%s433 + $0x82] sm:$0xff]
        %v640 = vld [vmem:[%s433 + $0x92] sm:$0xff]
        %v641 = vld [vmem:[%s433 + $0x9a] sm:$0xff]
        %v642 = vld [vmem:[%s433 + $0xaa] sm:$0xff]
        %v643 = vld [vmem:[%s433 + $0xb2] sm:$0xff]
        %660 = vrot.lane.b32.xlu0 %v628, 20
        %v661 = vpop.permute.xlu0 %660
        %662 = vrot.lane.b32.xlu0 %v629, 20
        %v663 = vpop.permute.xlu0 %662
        %664 = vrot.lane.b32.xlu0 %v630, 20
        %v665 = vpop.permute.xlu0 %664
        %666 = vrot.lane.b32.xlu0 %v631, 20
        %v667 = vpop.permute.xlu0 %666
        %668 = vrot.lane.b32.xlu0 %v632, 20
        %v669 = vpop.permute.xlu0 %668
        %670 = vrot.lane.b32.xlu0 %v633, 20
        %v671 = vpop.permute.xlu0 %670
        %672 = vrot.lane.b32.xlu0 %v634, 20
        %v673 = vpop.permute.xlu0 %672
        %674 = vrot.lane.b32.xlu0 %v635, 20
        %v675 = vpop.permute.xlu0 %674
        %676 = vrot.lane.b32.xlu0 %v636, 20
        %v677 = vpop.permute.xlu0 %676
        %678 = vrot.lane.b32.xlu0 %v637, 20
        %v679 = vpop.permute.xlu0 %678
        %680 = vrot.lane.b32.xlu0 %v638, 20
        %v681 = vpop.permute.xlu0 %680
        %682 = vrot.lane.b32.xlu0 %v639, 20
        %v683 = vpop.permute.xlu0 %682
        %684 = vrot.lane.b32.xlu0 %v640, 20
        %v685 = vpop.permute.xlu0 %684
        %686 = vrot.lane.b32.xlu0 %v641, 20
        %v687 = vpop.permute.xlu0 %686
        %688 = vrot.lane.b32.xlu0 %v642, 20
        %v689 = vpop.permute.xlu0 %688
        %690 = vrot.lane.b32.xlu0 %v643, 20
        %v691 = vpop.permute.xlu0 %690
        %vm708 = vcmask 195744
        %709 = vst.msk [vmem:[#allocation2] sm:$0xff] %vm708, %v661
        %710 = vst.msk [vmem:[#allocation2 + $0x8] sm:$0xff] %vm708, %v663
        %711 = vst.msk [vmem:[#allocation2 + $0x10] sm:$0xff] %vm708, %v665
        %712 = vst.msk [vmem:[#allocation2 + $0x18] sm:$0xff] %vm708, %v667
        %713 = vst.msk [vmem:[#allocation2 + $0x20] sm:$0xff] %vm708, %v669
        %714 = vst.msk [vmem:[#allocation2 + $0x28] sm:$0xff] %vm708, %v671
        %715 = vst.msk [vmem:[#allocation2 + $0x30] sm:$0xff] %vm708, %v673
        %716 = vst.msk [vmem:[#allocation2 + $0x38] sm:$0xff] %vm708, %v675
        %717 = vst.msk [vmem:[#allocation2 + $0x40] sm:$0xff] %vm708, %v677
        %718 = vst.msk [vmem:[#allocation2 + $0x48] sm:$0xff] %vm708, %v679
        %719 = vst.msk [vmem:[#allocation2 + $0x50] sm:$0xff] %vm708, %v681
        %720 = vst.msk [vmem:[#allocation2 + $0x58] sm:$0xff] %vm708, %v683
        %721 = vst.msk [vmem:[#allocation2 + $0x60] sm:$0xff] %vm708, %v685
        %722 = vst.msk [vmem:[#allocation2 + $0x68] sm:$0xff] %vm708, %v687
        %723 = vst.msk [vmem:[#allocation2 + $0x70] sm:$0xff] %vm708, %v689
        %724 = vst.msk [vmem:[#allocation2 + $0x78] sm:$0xff] %vm708, %v691
        %s725 = sadd.s32 %s201, 2
        %s726 = smul.u32 %s725, 24
        %s727 = scalar_lea.vmem %s197, %s726
        %v728 = vld [vmem:[%s727] sm:$0xff]
        %v729 = vld [vmem:[%s727 + $0x8] sm:$0xff]
        %v730 = vld [vmem:[%s727 + $0x18] sm:$0xff]
        %v731 = vld [vmem:[%s727 + $0x20] sm:$0xff]
        %v732 = vld [vmem:[%s727 + $0x30] sm:$0xff]
        %v733 = vld [vmem:[%s727 + $0x38] sm:$0xff]
        %v734 = vld [vmem:[%s727 + $0x48] sm:$0xff]
        %v735 = vld [vmem:[%s727 + $0x50] sm:$0xff]
        %v736 = vld [vmem:[%s727 + $0x60] sm:$0xff]
        %v737 = vld [vmem:[%s727 + $0x68] sm:$0xff]
        %v738 = vld [vmem:[%s727 + $0x78] sm:$0xff]
        %v739 = vld [vmem:[%s727 + $0x80] sm:$0xff]
        %v740 = vld [vmem:[%s727 + $0x90] sm:$0xff]
        %v741 = vld [vmem:[%s727 + $0x98] sm:$0xff]
        %v742 = vld [vmem:[%s727 + $0xa8] sm:$0xff]
        %v743 = vld [vmem:[%s727 + $0xb0] sm:$0xff]
        %760 = vrot.lane.b32.xlu0 %v728, 24
        %v761 = vpop.permute.xlu0 %760
        %762 = vrot.lane.b32.xlu0 %v729, 24
        %v763 = vpop.permute.xlu0 %762
        %764 = vrot.lane.b32.xlu0 %v730, 24
        %v765 = vpop.permute.xlu0 %764
        %766 = vrot.lane.b32.xlu0 %v731, 24
        %v767 = vpop.permute.xlu0 %766
        %768 = vrot.lane.b32.xlu0 %v732, 24
        %v769 = vpop.permute.xlu0 %768
        %770 = vrot.lane.b32.xlu0 %v733, 24
        %v771 = vpop.permute.xlu0 %770
        %772 = vrot.lane.b32.xlu0 %v734, 24
        %v773 = vpop.permute.xlu0 %772
        %774 = vrot.lane.b32.xlu0 %v735, 24
        %v775 = vpop.permute.xlu0 %774
        %776 = vrot.lane.b32.xlu0 %v736, 24
        %v777 = vpop.permute.xlu0 %776
        %778 = vrot.lane.b32.xlu0 %v737, 24
        %v779 = vpop.permute.xlu0 %778
        %780 = vrot.lane.b32.xlu0 %v738, 24
        %v781 = vpop.permute.xlu0 %780
        %782 = vrot.lane.b32.xlu0 %v739, 24
        %v783 = vpop.permute.xlu0 %782
        %784 = vrot.lane.b32.xlu0 %v740, 24
        %v785 = vpop.permute.xlu0 %784
        %786 = vrot.lane.b32.xlu0 %v741, 24
        %v787 = vpop.permute.xlu0 %786
        %788 = vrot.lane.b32.xlu0 %v742, 24
        %v789 = vpop.permute.xlu0 %788
        %790 = vrot.lane.b32.xlu0 %v743, 24
        %v791 = vpop.permute.xlu0 %790
        %vm808 = vcmask 228544
        %809 = vst.msk [vmem:[#allocation2] sm:$0xff] %vm808, %v761
        %810 = vst.msk [vmem:[#allocation2 + $0x8] sm:$0xff] %vm808, %v763
        %811 = vst.msk [vmem:[#allocation2 + $0x10] sm:$0xff] %vm808, %v765
        %812 = vst.msk [vmem:[#allocation2 + $0x18] sm:$0xff] %vm808, %v767
        %813 = vst.msk [vmem:[#allocation2 + $0x20] sm:$0xff] %vm808, %v769
        %814 = vst.msk [vmem:[#allocation2 + $0x28] sm:$0xff] %vm808, %v771
        %815 = vst.msk [vmem:[#allocation2 + $0x30] sm:$0xff] %vm808, %v773
        %816 = vst.msk [vmem:[#allocation2 + $0x38] sm:$0xff] %vm808, %v775
        %817 = vst.msk [vmem:[#allocation2 + $0x40] sm:$0xff] %vm808, %v777
        %818 = vst.msk [vmem:[#allocation2 + $0x48] sm:$0xff] %vm808, %v779
        %819 = vst.msk [vmem:[#allocation2 + $0x50] sm:$0xff] %vm808, %v781
        %820 = vst.msk [vmem:[#allocation2 + $0x58] sm:$0xff] %vm808, %v783
        %821 = vst.msk [vmem:[#allocation2 + $0x60] sm:$0xff] %vm808, %v785
        %822 = vst.msk [vmem:[#allocation2 + $0x68] sm:$0xff] %vm808, %v787
        %823 = vst.msk [vmem:[#allocation2 + $0x70] sm:$0xff] %vm808, %v789
        %824 = vst.msk [vmem:[#allocation2 + $0x78] sm:$0xff] %vm808, %v791
        %v825 = vld [vmem:[%s727 + $0x1] sm:$0xff]
        %v826 = vld [vmem:[%s727 + $0x9] sm:$0xff]
        %v827 = vld [vmem:[%s727 + $0x19] sm:$0xff]
        %v828 = vld [vmem:[%s727 + $0x21] sm:$0xff]
        %v829 = vld [vmem:[%s727 + $0x31] sm:$0xff]
        %v830 = vld [vmem:[%s727 + $0x39] sm:$0xff]
        %v831 = vld [vmem:[%s727 + $0x49] sm:$0xff]
        %v832 = vld [vmem:[%s727 + $0x51] sm:$0xff]
        %v833 = vld [vmem:[%s727 + $0x61] sm:$0xff]
        %v834 = vld [vmem:[%s727 + $0x69] sm:$0xff]
        %v835 = vld [vmem:[%s727 + $0x79] sm:$0xff]
        %v836 = vld [vmem:[%s727 + $0x81] sm:$0xff]
        %v837 = vld [vmem:[%s727 + $0x91] sm:$0xff]
        %v838 = vld [vmem:[%s727 + $0x99] sm:$0xff]
        %v839 = vld [vmem:[%s727 + $0xa9] sm:$0xff]
        %v840 = vld [vmem:[%s727 + $0xb1] sm:$0xff]
        %857 = vrot.lane.b32.xlu0 %v825, 28
        %v858 = vpop.permute.xlu0 %857
        %859 = vrot.lane.b32.xlu0 %v826, 28
        %v860 = vpop.permute.xlu0 %859
        %861 = vrot.lane.b32.xlu0 %v827, 28
        %v862 = vpop.permute.xlu0 %861
        %863 = vrot.lane.b32.xlu0 %v828, 28
        %v864 = vpop.permute.xlu0 %863
        %865 = vrot.lane.b32.xlu0 %v829, 28
        %v866 = vpop.permute.xlu0 %865
        %867 = vrot.lane.b32.xlu0 %v830, 28
        %v868 = vpop.permute.xlu0 %867
        %869 = vrot.lane.b32.xlu0 %v831, 28
        %v870 = vpop.permute.xlu0 %869
        %871 = vrot.lane.b32.xlu0 %v832, 28
        %v872 = vpop.permute.xlu0 %871
        %873 = vrot.lane.b32.xlu0 %v833, 28
        %v874 = vpop.permute.xlu0 %873
        %875 = vrot.lane.b32.xlu0 %v834, 28
        %v876 = vpop.permute.xlu0 %875
        %877 = vrot.lane.b32.xlu0 %v835, 28
        %v878 = vpop.permute.xlu0 %877
        %879 = vrot.lane.b32.xlu0 %v836, 28
        %v880 = vpop.permute.xlu0 %879
        %881 = vrot.lane.b32.xlu0 %v837, 28
        %v882 = vpop.permute.xlu0 %881
        %883 = vrot.lane.b32.xlu0 %v838, 28
        %v884 = vpop.permute.xlu0 %883
        %885 = vrot.lane.b32.xlu0 %v839, 28
        %v886 = vpop.permute.xlu0 %885
        %887 = vrot.lane.b32.xlu0 %v840, 28
        %v888 = vpop.permute.xlu0 %887
        %vm905 = vcmask 261344
        %906 = vst.msk [vmem:[#allocation2] sm:$0xff] %vm905, %v858
        %907 = vst.msk [vmem:[#allocation2 + $0x8] sm:$0xff] %vm905, %v860
        %908 = vst.msk [vmem:[#allocation2 + $0x10] sm:$0xff] %vm905, %v862
        %909 = vst.msk [vmem:[#allocation2 + $0x18] sm:$0xff] %vm905, %v864
        %910 = vst.msk [vmem:[#allocation2 + $0x20] sm:$0xff] %vm905, %v866
        %911 = vst.msk [vmem:[#allocation2 + $0x28] sm:$0xff] %vm905, %v868
        %912 = vst.msk [vmem:[#allocation2 + $0x30] sm:$0xff] %vm905, %v870
        %913 = vst.msk [vmem:[#allocation2 + $0x38] sm:$0xff] %vm905, %v872
        %914 = vst.msk [vmem:[#allocation2 + $0x40] sm:$0xff] %vm905, %v874
        %915 = vst.msk [vmem:[#allocation2 + $0x48] sm:$0xff] %vm905, %v876
        %916 = vst.msk [vmem:[#allocation2 + $0x50] sm:$0xff] %vm905, %v878
        %917 = vst.msk [vmem:[#allocation2 + $0x58] sm:$0xff] %vm905, %v880
        %918 = vst.msk [vmem:[#allocation2 + $0x60] sm:$0xff] %vm905, %v882
        %919 = vst.msk [vmem:[#allocation2 + $0x68] sm:$0xff] %vm905, %v884
        %920 = vst.msk [vmem:[#allocation2 + $0x70] sm:$0xff] %vm905, %v886
        %921 = vst.msk [vmem:[#allocation2 + $0x78] sm:$0xff] %vm905, %v888
        %v922 = vld [vmem:[%s727 + $0x2] sm:$0xff]
        %v923 = vld [vmem:[%s727 + $0xa] sm:$0xff]
        %v924 = vld [vmem:[%s727 + $0x1a] sm:$0xff]
        %v925 = vld [vmem:[%s727 + $0x22] sm:$0xff]
        %v926 = vld [vmem:[%s727 + $0x32] sm:$0xff]
        %v927 = vld [vmem:[%s727 + $0x3a] sm:$0xff]
        %v928 = vld [vmem:[%s727 + $0x4a] sm:$0xff]
        %v929 = vld [vmem:[%s727 + $0x52] sm:$0xff]
        %v930 = vld [vmem:[%s727 + $0x62] sm:$0xff]
        %v931 = vld [vmem:[%s727 + $0x6a] sm:$0xff]
        %v932 = vld [vmem:[%s727 + $0x7a] sm:$0xff]
        %v933 = vld [vmem:[%s727 + $0x82] sm:$0xff]
        %v934 = vld [vmem:[%s727 + $0x92] sm:$0xff]
        %v935 = vld [vmem:[%s727 + $0x9a] sm:$0xff]
        %v936 = vld [vmem:[%s727 + $0xaa] sm:$0xff]
        %v937 = vld [vmem:[%s727 + $0xb2] sm:$0xff]
        %954 = vrot.lane.b32.xlu0 %v922, 32
        %v955 = vpop.permute.xlu0 %954
        %956 = vrot.lane.b32.xlu0 %v923, 32
        %v957 = vpop.permute.xlu0 %956
        %958 = vrot.lane.b32.xlu0 %v924, 32
        %v959 = vpop.permute.xlu0 %958
        %960 = vrot.lane.b32.xlu0 %v925, 32
        %v961 = vpop.permute.xlu0 %960
        %962 = vrot.lane.b32.xlu0 %v926, 32
        %v963 = vpop.permute.xlu0 %962
        %964 = vrot.lane.b32.xlu0 %v927, 32
        %v965 = vpop.permute.xlu0 %964
        %966 = vrot.lane.b32.xlu0 %v928, 32
        %v967 = vpop.permute.xlu0 %966
        %968 = vrot.lane.b32.xlu0 %v929, 32
        %v969 = vpop.permute.xlu0 %968
        %970 = vrot.lane.b32.xlu0 %v930, 32
        %v971 = vpop.permute.xlu0 %970
        %972 = vrot.lane.b32.xlu0 %v931, 32
        %v973 = vpop.permute.xlu0 %972
        %974 = vrot.lane.b32.xlu0 %v932, 32
        %v975 = vpop.permute.xlu0 %974
        %976 = vrot.lane.b32.xlu0 %v933, 32
        %v977 = vpop.permute.xlu0 %976
        %978 = vrot.lane.b32.xlu0 %v934, 32
        %v979 = vpop.permute.xlu0 %978
        %980 = vrot.lane.b32.xlu0 %v935, 32
        %v981 = vpop.permute.xlu0 %980
        %982 = vrot.lane.b32.xlu0 %v936, 32
        %v983 = vpop.permute.xlu0 %982
        %984 = vrot.lane.b32.xlu0 %v937, 32
        %v985 = vpop.permute.xlu0 %984
        %vm1002 = vcmask 294144
        %1003 = vst.msk [vmem:[#allocation2] sm:$0xff] %vm1002, %v955
        %1004 = vst.msk [vmem:[#allocation2 + $0x8] sm:$0xff] %vm1002, %v957
        %1005 = vst.msk [vmem:[#allocation2 + $0x10] sm:$0xff] %vm1002, %v959
        %1006 = vst.msk [vmem:[#allocation2 + $0x18] sm:$0xff] %vm1002, %v961
        %1007 = vst.msk [vmem:[#allocation2 + $0x20] sm:$0xff] %vm1002, %v963
        %1008 = vst.msk [vmem:[#allocation2 + $0x28] sm:$0xff] %vm1002, %v965
        %1009 = vst.msk [vmem:[#allocation2 + $0x30] sm:$0xff] %vm1002, %v967
        %1010 = vst.msk [vmem:[#allocation2 + $0x38] sm:$0xff] %vm1002, %v969
        %1011 = vst.msk [vmem:[#allocation2 + $0x40] sm:$0xff] %vm1002, %v971
        %1012 = vst.msk [vmem:[#allocation2 + $0x48] sm:$0xff] %vm1002, %v973
        %1013 = vst.msk [vmem:[#allocation2 + $0x50] sm:$0xff] %vm1002, %v975
        %1014 = vst.msk [vmem:[#allocation2 + $0x58] sm:$0xff] %vm1002, %v977
        %1015 = vst.msk [vmem:[#allocation2 + $0x60] sm:$0xff] %vm1002, %v979
        %1016 = vst.msk [vmem:[#allocation2 + $0x68] sm:$0xff] %vm1002, %v981
        %1017 = vst.msk [vmem:[#allocation2 + $0x70] sm:$0xff] %vm1002, %v983
        %1018 = vst.msk [vmem:[#allocation2 + $0x78] sm:$0xff] %vm1002, %v985
        %v1019 = vld [vmem:[#allocation2] sm:$0xff]
        %v1020 = vld [vmem:[#allocation2 + $0x8] sm:$0xff]
        %v1021 = vld [vmem:[#allocation2 + $0x10] sm:$0xff]
        %v1022 = vld [vmem:[#allocation2 + $0x18] sm:$0xff]
        %v1023 = vld [vmem:[#allocation2 + $0x20] sm:$0xff]
        %v1024 = vld [vmem:[#allocation2 + $0x28] sm:$0xff]
        %v1025 = vld [vmem:[#allocation2 + $0x30] sm:$0xff]
        %v1026 = vld [vmem:[#allocation2 + $0x38] sm:$0xff]
        %v1027 = vld [vmem:[#allocation2 + $0x40] sm:$0xff]
        %v1028 = vld [vmem:[#allocation2 + $0x48] sm:$0xff]
        %v1029 = vld [vmem:[#allocation2 + $0x50] sm:$0xff]
        %v1030 = vld [vmem:[#allocation2 + $0x58] sm:$0xff]
        %v1031 = vld [vmem:[#allocation2 + $0x60] sm:$0xff]
        %v1032 = vld [vmem:[#allocation2 + $0x68] sm:$0xff]
        %v1033 = vld [vmem:[#allocation2 + $0x70] sm:$0xff]
        %v1034 = vld [vmem:[#allocation2 + $0x78] sm:$0xff]
        %v1035 = vld [vmem:[%s1] sm:$0xff]
        %v1036 = vld [vmem:[%s1 + $0x8] sm:$0xff]
        %v1037 = vld [vmem:[%s1 + $0x10] sm:$0xff]
        %v1038 = vld [vmem:[%s1 + $0x18] sm:$0xff]
        %v1039 = vld [vmem:[%s1 + $0x20] sm:$0xf]
        %vm1040 = vcmask 293888
        %v1042 = vsel %vm1040, %v1019, 0
        %v1045 = vsel %vm1040, %v1020, 0
        %v1048 = vsel %vm1040, %v1021, 0
        %v1051 = vsel %vm1040, %v1022, 0
        %v1054 = vsel %vm1040, %v1023, 0
        %v1057 = vsel %vm1040, %v1024, 0
        %v1060 = vsel %vm1040, %v1025, 0
        %v1063 = vsel %vm1040, %v1026, 0
        %v1066 = vsel %vm1040, %v1027, 0
        %v1069 = vsel %vm1040, %v1028, 0
        %v1072 = vsel %vm1040, %v1029, 0
        %v1075 = vsel %vm1040, %v1030, 0
        %v1078 = vsel %vm1040, %v1031, 0
        %v1081 = vsel %vm1040, %v1032, 0
        %v1084 = vsel %vm1040, %v1033, 0
        %v1087 = vsel %vm1040, %v1034, 0
        %vm1089 = vcmask 1043456
        %v1091 = vsel %vm1089, %v1039, 0
        %1093 = vmatpush.msra.mxu0 0.0
        %1094 = vmatpush.msra.mxu0 0.0
        %1095 = vmatpush.msra.mxu0 0.0
        %1096 = vmatpush.msra.mxu0 0.0
        %1097 = vmatpush.msra.mxu0 0.0
        %1098 = vmatpush.msra.mxu0 0.0
        %1099 = vmatpush.msra.mxu0 0.0
        %1100 = vmatpush.msra.mxu0 0.0
        %1101 = vmatpush.msra.mxu0 0.0
        %1102 = vmatpush.msra.mxu0 0.0
        %1103 = vmatpush.msra.mxu0 0.0
        %1104 = vmatpush.msra.mxu0 %v1091
        %1105 = vmatpush.msra.mxu0 %v1038
        %1106 = vmatpush.msra.mxu0 %v1037
        %1107 = vmatpush.msra.mxu0 %v1036
        %1108 = vmatpush.msra.mxu0 %v1035
        %1109 = vmatmul.f32.gmra.mxu0 %v1042
        %v1110 = vpop.f32.mrf.mxu0
        %v1111 = vadd.f32 0.0, %v1110
        %1112 = vmatmul.f32.gmra.mxu0 %v1045
        %v1113 = vpop.f32.mrf.mxu0
        %v1114 = vadd.f32 0.0, %v1113
        %1115 = vmatmul.f32.gmra.mxu0 %v1048
        %v1116 = vpop.f32.mrf.mxu0
        %v1117 = vadd.f32 0.0, %v1116
        %1118 = vmatmul.f32.gmra.mxu0 %v1051
        %v1119 = vpop.f32.mrf.mxu0
        %v1120 = vadd.f32 0.0, %v1119
        %1121 = vmatmul.f32.gmra.mxu0 %v1054
        %v1122 = vpop.f32.mrf.mxu0
        %v1123 = vadd.f32 0.0, %v1122
        %1124 = vmatmul.f32.gmra.mxu0 %v1057
        %v1125 = vpop.f32.mrf.mxu0
        %v1126 = vadd.f32 0.0, %v1125
        %1127 = vmatmul.f32.gmra.mxu0 %v1060
        %v1128 = vpop.f32.mrf.mxu0
        %v1129 = vadd.f32 0.0, %v1128
        %1130 = vmatmul.f32.gmra.mxu0 %v1063
        %v1131 = vpop.f32.mrf.mxu0
        %v1132 = vadd.f32 0.0, %v1131
        %1133 = vmatmul.f32.gmra.mxu0 %v1066
        %v1134 = vpop.f32.mrf.mxu0
        %v1135 = vadd.f32 0.0, %v1134
        %1136 = vmatmul.f32.gmra.mxu0 %v1069
        %v1137 = vpop.f32.mrf.mxu0
        %v1138 = vadd.f32 0.0, %v1137
        %1139 = vmatmul.f32.gmra.mxu0 %v1072
        %v1140 = vpop.f32.mrf.mxu0
        %v1141 = vadd.f32 0.0, %v1140
        %1142 = vmatmul.f32.gmra.mxu0 %v1075
        %v1143 = vpop.f32.mrf.mxu0
        %v1144 = vadd.f32 0.0, %v1143
        %1145 = vmatmul.f32.gmra.mxu0 %v1078
        %v1146 = vpop.f32.mrf.mxu0
        %v1147 = vadd.f32 0.0, %v1146
        %1148 = vmatmul.f32.gmra.mxu0 %v1081
        %v1149 = vpop.f32.mrf.mxu0
        %v1150 = vadd.f32 0.0, %v1149
        %1151 = vmatmul.f32.gmra.mxu0 %v1084
        %v1152 = vpop.f32.mrf.mxu0
        %v1153 = vadd.f32 0.0, %v1152
        %1154 = vmatmul.f32.gmra.mxu0 %v1087
        %v1155 = vpop.f32.mrf.mxu0
        %v1156 = vadd.f32 0.0, %v1155
        %1157 = vdwg.mxu0
        %1158 = vst [vmem:[%s185] sm:$0xff] %v1111
        %1159 = vst [vmem:[%s185 + $0x8] sm:$0xff] %v1114
        %1160 = vst [vmem:[%s185 + $0x10] sm:$0xff] %v1117
        %1161 = vst [vmem:[%s185 + $0x18] sm:$0xff] %v1120
        %1162 = vst [vmem:[%s185 + $0x20] sm:$0xff] %v1123
        %1163 = vst [vmem:[%s185 + $0x28] sm:$0xff] %v1126
        %1164 = vst [vmem:[%s185 + $0x30] sm:$0xff] %v1129
        %1165 = vst [vmem:[%s185 + $0x38] sm:$0xff] %v1132
        %1166 = vst [vmem:[%s185 + $0x40] sm:$0xff] %v1135
        %1167 = vst [vmem:[%s185 + $0x48] sm:$0xff] %v1138
        %1168 = vst [vmem:[%s185 + $0x50] sm:$0xff] %v1141
        %1169 = vst [vmem:[%s185 + $0x58] sm:$0xff] %v1144
        %1170 = vst [vmem:[%s185 + $0x60] sm:$0xff] %v1147
        %1171 = vst [vmem:[%s185 + $0x68] sm:$0xff] %v1150
        %1172 = vst [vmem:[%s185 + $0x70] sm:$0xff] %v1153
        %1173 = vst [vmem:[%s185 + $0x78] sm:$0xff] %v1156
        %v1174 = vadd.f32 %v1111, %v1114
        %v1175 = vadd.f32 %v1174, %v1117
        %v1176 = vadd.f32 %v1175, %v1120
        %v1177 = vadd.f32 %v1176, %v1123
        %v1178 = vadd.f32 %v1177, %v1126
        %v1179 = vadd.f32 %v1178, %v1129
        %v1180 = vadd.f32 %v1179, %v1132
        %v1181 = vadd.f32 %v1180, %v1135
        %v1182 = vadd.f32 %v1181, %v1138
        %v1183 = vadd.f32 %v1182, %v1141
        %v1184 = vadd.f32 %v1183, %v1144
        %v1185 = vadd.f32 %v1184, %v1147
        %v1186 = vadd.f32 %v1185, %v1150
        %v1187 = vadd.f32 %v1186, %v1153
        %v1188 = vadd.f32 %v1187, %v1156
        %v1189 = vrot.slane %v1188, 4
        %v1190 = vadd.f32 %v1188, %v1189
        %v1191 = vrot.slane %v1190, 2
        %v1192 = vadd.f32 %v1190, %v1191
        %v1193 = vrot.slane %v1192, 1
        %v1194 = vadd.f32 %v1192, %v1193
        %v1195 = vmul.f32 %v1111, %v1111
        %v1196 = vmul.f32 %v1114, %v1114
        %v1197 = vmul.f32 %v1117, %v1117
        %v1198 = vmul.f32 %v1120, %v1120
        %v1199 = vmul.f32 %v1123, %v1123
        %v1200 = vmul.f32 %v1126, %v1126
        %v1201 = vmul.f32 %v1129, %v1129
        %v1202 = vmul.f32 %v1132, %v1132
        %v1203 = vmul.f32 %v1135, %v1135
        %v1204 = vmul.f32 %v1138, %v1138
        %v1205 = vmul.f32 %v1141, %v1141
        %v1206 = vmul.f32 %v1144, %v1144
        %v1207 = vmul.f32 %v1147, %v1147
        %v1208 = vmul.f32 %v1150, %v1150
        %v1209 = vmul.f32 %v1153, %v1153
        %v1210 = vmul.f32 %v1156, %v1156
        %v1211 = vadd.f32 %v1195, %v1196
        %v1212 = vadd.f32 %v1211, %v1197
        %v1213 = vadd.f32 %v1212, %v1198
        %v1214 = vadd.f32 %v1213, %v1199
        %v1215 = vadd.f32 %v1214, %v1200
        %v1216 = vadd.f32 %v1215, %v1201
        %v1217 = vadd.f32 %v1216, %v1202
        %v1218 = vadd.f32 %v1217, %v1203
        %v1219 = vadd.f32 %v1218, %v1204
        %v1220 = vadd.f32 %v1219, %v1205
        %v1221 = vadd.f32 %v1220, %v1206
        %v1222 = vadd.f32 %v1221, %v1207
        %v1223 = vadd.f32 %v1222, %v1208
        %v1224 = vadd.f32 %v1223, %v1209
        %v1225 = vadd.f32 %v1224, %v1210
        %v1226 = vrot.slane %v1225, 4
        %v1227 = vadd.f32 %v1225, %v1226
        %v1228 = vrot.slane %v1227, 2
        %v1229 = vadd.f32 %v1227, %v1228
        %v1230 = vrot.slane %v1229, 1
        %v1231 = vadd.f32 %v1229, %v1230
        %vm1232 = vcmask 1040384
        %v1233 = vsel %vm1232, %v1194, %v1231
        %1234 = vst [vmem:[%s192] sm:$0x3] %v1233
        %s1235 = sand.u32 %s90, 1
        %s1236 = scalar_lea.sflag [#allocation4], %s1235
        %s1237 = sand.u32 %s90, 1
        %s1238 = smul.addr %s1237, 128
        %s1239 = scalar_lea.vmem [#allocation3], %s1238
        %s1240 = sand.u32 %s120, 1
        %s1241 = scalar_lea.sflag [#allocation6], %s1240
        %s1242 = sand.u32 %s120, 1
        %s1243 = smul.addr %s1242, 2
        %s1244 = scalar_lea.vmem [#allocation5], %s1243
        // Predicated region
        $region29: #{tpu_custom_call.1} parent=27 // pred_check
          %p1245 = pneg %p100
        $region30: #{tpu_custom_call.1} parent=27 // pred_check_branch
          %1247 = sbr.rel (%p1245) target = $region32
        $region31: #{tpu_custom_call.1} parent=27 // pred_region
          %s1248 = smul.u32 8, %s26
          %1250 = vsyncadd %s1236, 0
          %s1251 = smul.addr %s1248, 2
          %s1252 = smul.addr %s25, 32
          %s1253 = sadd.s32 %s1251, %s1252
          %s1254 = smul.addr %s1253, 8
          %s1255 = scalar_lea.hbm %s2, %s1254
          %s1256 = sshll.u32 %s1239, 4
          %s1257 = int_to_ptr.vmem [resolvable:$true] %s1256
          %s1258 = sshll.u32 %s1255, 4
          %s1259 = int_to_ptr.hbm [resolvable:$true] %s1258
          %1264 = dma.vmem_to_hbm [thread:$0]  %s1257, 2048, %s1259, %s1236, 128, 128, 8
        $region32: #{tpu_custom_call.1} parent=27 // pred_fallthru
          _
        // Predicated region
        $region33: #{tpu_custom_call.1} parent=27 // pred_check
          %p1265 = pneg %p130
        $region34: #{tpu_custom_call.1} parent=27 // pred_check_branch
          %1267 = sbr.rel (%p1265) target = $region36
        $region35: #{tpu_custom_call.1} parent=27 // pred_region
          %s1268 = smul.u32 %s25, 2
          %s1269 = sadd.s32 %s1268, %s26
          %1271 = vsyncadd %s1241, 0
          %s1272 = smul.addr %s1269, 2
          %s1273 = scalar_lea.hbm %s3, %s1272
          %s1275 = sshll.u32 %s1244, 4
          %s1276 = int_to_ptr.vmem [resolvable:$true] %s1275
          %s1277 = sshll.u32 %s1273, 4
          %s1278 = int_to_ptr.hbm [resolvable:$true] %s1277
          %1280 = dma.vmem_to_hbm [thread:$0]  %s1276, 32, %s1278, %s1241
        $region36: #{tpu_custom_call.1} parent=27 // pred_fallthru
          _
      $region28: #{tpu_custom_call.1} parent=5 // pred_fallthru
        _
      %p1281 = scmp.le.s32.totalorder 2, %s16
      // Predicated region
      $region37: #{tpu_custom_call.1} parent=5 // pred_check
        %p1282 = pneg %p1281
      $region38: #{tpu_custom_call.1} parent=5 // pred_check_branch
        %1284 = sbr.rel (%p1282) target = $region40
      $region39: #{tpu_custom_call.1} parent=5 // pred_region
        %s1285 = ssub.s32 %s16, 2
        // Predicated region
        $region41: #{tpu_custom_call.1} parent=39 // pred_check
          %p1286 = pneg %p106
        $region42: #{tpu_custom_call.1} parent=39 // pred_check_branch
          %1288 = sbr.rel (%p1286) target = $region44
        $region43: #{tpu_custom_call.1} parent=39 // pred_region
          %s1289 = sand.u32 %s91, 1
          %s1290 = scalar_lea.sflag [#allocation4], %s1289
          %s1291 = sand.u32 %s91, 1
          %s1292 = smul.addr %s1291, 128
          %s1293 = scalar_lea.vmem [#allocation3], %s1292
          %1295 = dma.done %s1290, 2048
        $region44: #{tpu_custom_call.1} parent=39 // pred_fallthru
          _
        // Predicated region
        $region45: #{tpu_custom_call.1} parent=39 // pred_check
          %p1296 = pneg %p136
        $region46: #{tpu_custom_call.1} parent=39 // pred_check_branch
          %1298 = sbr.rel (%p1296) target = $region48
        $region47: #{tpu_custom_call.1} parent=39 // pred_region
          %s1299 = sand.u32 %s121, 1
          %s1300 = scalar_lea.sflag [#allocation6], %s1299
          %s1301 = sand.u32 %s121, 1
          %s1302 = smul.addr %s1301, 2
          %s1303 = scalar_lea.vmem [#allocation5], %s1302
          %1305 = dma.done %s1300, 32
        $region48: #{tpu_custom_call.1} parent=39 // pred_fallthru
          _
      $region40: #{tpu_custom_call.1} parent=5 // pred_fallthru
        _
    $region6: #{tpu_custom_call.1} parent=1 // loop_footer
      %s20 = sadd.s32 1, %s16
    $region7: #{tpu_custom_call.1} parent=1 // loop_footer_branch
      %15 = sbr.rel target = $region3
    $region8: #{tpu_custom_call.1} parent=1 // loop_exit
      _
    %1306 = vsyncpa [#allocation4], 1
    %s1307 = scalar_lea.sflag [#allocation4], 1
    %1308 = vsyncpa %s1307, 1
    %1309 = vsyncpa [#allocation6], 1
    %s1310 = scalar_lea.sflag [#allocation6], 1
    %1311 = vsyncpa %s1310, 1

</llo_original>
